<compile_context>
chip_gen: v7x
topology: tpu7x:2x2x1
jax: 0.10.0
libtpu: 0.0.40
codegen_flags: <defaults>
</compile_context>

<pallas_src>
import jax
import jax.numpy as jnp
from jax import lax
from jax.experimental import pallas as pl
from jax.experimental.pallas import tpu as pltpu


def _round_up(x, m):
    return ((x + m - 1) // m) * m


def _at_loss_kernel(logits_ref, labels_ref, mask_ref, num_ref, den_ref):
    t = pl.program_id(1)

    @pl.when(t == 0)
    def _init():
        num_ref[...] = jnp.zeros_like(num_ref)
        den_ref[...] = jnp.zeros_like(den_ref)

    logits = logits_ref[0]                          # (L, TN) f32, labels on sublanes
    labels = labels_ref[0].astype(jnp.float32)      # (L, TN) f32 in {0, 1}
    mask = mask_ref[...].astype(jnp.float32)        # (1, 1, TN)

    L, TN = logits.shape
    row = lax.broadcasted_iota(jnp.int32, (L, TN), 0)
    is_th = row == 0                                # class 0 = threshold class

    # labels with the threshold class zeroed (needed for the loss1 weighting).
    labels = jnp.where(is_th, 0.0, labels)
    p_mask = jnp.logical_or(labels > 0.0, is_th)    # positives OR threshold
    n_mask = labels <= 0.0                          # negatives (incl. threshold)

    NEG = jnp.float32(-1e30)
    logit1 = jnp.where(p_mask, logits, NEG)
    logit2 = jnp.where(n_mask, logits, NEG)

    # Branch 1: full log-softmax over the label (sublane) axis, weighted by labels.
    m1 = jnp.max(logit1, axis=0, keepdims=True)                         # (1, TN)
    lse1 = m1 + jnp.log(jnp.sum(jnp.exp(logit1 - m1), axis=0, keepdims=True))
    loss1 = jnp.sum(labels * (lse1 - logit1), axis=0, keepdims=True)    # (1, TN)

    # Branch 2: only the class-0 log-prob is needed: loss2 = lse2 - logits[0].
    m2 = jnp.max(logit2, axis=0, keepdims=True)
    lse2 = m2 + jnp.log(jnp.sum(jnp.exp(logit2 - m2), axis=0, keepdims=True))
    loss2 = lse2 - logits[0:1, :]                                       # (1, TN)

    masked_loss = (loss1 + loss2).reshape(1, 1, TN) * mask              # (1,1,TN)
    num_ref[...] += masked_loss
    den_ref[...] += mask


def at_loss(logits, labels, label_mask):
    """
    logits:     [B, E, E, L] float
    labels:     [B, E, E, L] {0,1} (bool-like) — class 0 is the threshold class
    label_mask: [B, E, E]    {0,1}
    returns scalar loss (float32)
    """
    B, E, _, L = logits.shape
    N = E * E

    # Lane-dense layout: N on lanes, L on sublanes.
    logits_t = jnp.transpose(logits.reshape(B, N, L), (0, 2, 1)).astype(jnp.float32)  # (B, L, N)
    labels_t = jnp.transpose(labels.reshape(B, N, L), (0, 2, 1)).astype(jnp.int8)     # (B, L, N)
    mask_t = label_mask.reshape(B, 1, N).astype(jnp.float32)                          # (B, 1, N)

    # Lane tile (multiple of 128, ~<=512) and padded N; padded columns have
    # mask == 0 so they contribute nothing to numerator or denominator.
    NT = max(1, -(-N // 512))
    TN = _round_up(-(-N // NT), 128)
    Npad = NT * TN
    pad = Npad - N
    if pad:
        logits_t = jnp.pad(logits_t, ((0, 0), (0, 0), (0, pad)))
        labels_t = jnp.pad(labels_t, ((0, 0), (0, 0), (0, pad)))
        mask_t = jnp.pad(mask_t, ((0, 0), (0, 0), (0, pad)))

    num, den = pl.pallas_call(
        _at_loss_kernel,
        out_shape=(
            jax.ShapeDtypeStruct((B, 1, TN), jnp.float32),
            jax.ShapeDtypeStruct((B, 1, TN), jnp.float32),
        ),
        grid_spec=pltpu.PrefetchScalarGridSpec(
            num_scalar_prefetch=0,
            grid=(B, NT),
            in_specs=[
                pl.BlockSpec((1, L, TN), lambda b, t: (b, 0, t)),
                pl.BlockSpec((1, L, TN), lambda b, t: (b, 0, t)),
                pl.BlockSpec((1, 1, TN), lambda b, t: (b, 0, t)),
            ],
            out_specs=(
                pl.BlockSpec((1, 1, TN), lambda b, t: (b, 0, 0)),
                pl.BlockSpec((1, 1, TN), lambda b, t: (b, 0, 0)),
            ),
        ),
        compiler_params=pltpu.CompilerParams(
            dimension_semantics=("parallel", "arbitrary")),
    )(logits_t, labels_t, mask_t)

    # Finish the tiny reductions in the wrapper.
    # NOTE: matches the PyTorch module — an example with an all-zero mask
    # would divide by zero, same as the original.
    per_example = jnp.sum(num, axis=(1, 2)) / jnp.sum(den, axis=(1, 2))   # [B]
    return jnp.mean(per_example)


def _at_loss_ref(logits, labels, label_mask):
    # Pure-JAX reference mirroring the PyTorch semantics, for verification.
    logits = logits.astype(jnp.float32)
    labels = labels.astype(jnp.float32)
    mask = label_mask.astype(jnp.float32)
    th_label = jnp.zeros_like(labels).at[..., 0].set(1.0)
    labels = labels.at[..., 0].set(0.0)
    p_mask = jnp.logical_or(labels > 0, th_label > 0)
    n_mask = labels <= 0
    logit1 = logits - jnp.where(p_mask, 0.0, 1e30)
    logit2 = logits - jnp.where(n_mask, 0.0, 1e30)
    loss1 = -jnp.sum(jax.nn.log_softmax(logit1, axis=-1) * labels, axis=-1)
    loss2 = -jnp.sum(jax.nn.log_softmax(logit2, axis=-1) * th_label, axis=-1)
    loss = loss1 + loss2
    per_ex = jnp.sum(loss * mask, axis=(1, 2)) / jnp.sum(mask, axis=(1, 2))
    return jnp.mean(per_ex)


if __name__ == "__main__":
    key = jax.random.PRNGKey(0)
    B, E, L = 2, 8, 8  # batch, max_ent, num_labels

    k1, k2, k3 = jax.random.split(key, 3)
    logits = jax.random.normal(k1, (B, E, E, L), dtype=jnp.float32)
    # boolean multi-hot labels (class 0 is the threshold class)
    labels = (jax.random.uniform(k2, (B, E, E, L)) > 0.7).astype(jnp.float32)
    # entity-pair mask; guarantee at least one valid pair per example
    label_mask = (jax.random.uniform(k3, (B, E, E)) > 0.3).astype(jnp.float32)
    label_mask = label_mask.at[:, 0, 0].set(1.0)

    out = jax.block_until_ready(at_loss(logits, labels, label_mask))
    ref = _at_loss_ref(logits, labels, label_mask)
    assert jnp.allclose(out, ref, rtol=1e-5, atol=1e-5), (out, ref)

    print("KERNEL_OK")
</pallas_src>

<mosaic_0001>
module attributes {stable_mosaic.version = 11 : i64} {
  func.func @_at_loss_kernel(%arg0: i32, %arg1: i32, %arg2: memref<1x8x128xf32, #tpu.memory_space<vmem>>, %arg3: memref<1x8x128xi8, #tpu.memory_space<vmem>>, %arg4: memref<1x1x128xf32, #tpu.memory_space<vmem>>, %arg5: memref<1x1x128xf32, #tpu.memory_space<vmem>>, %arg6: memref<1x1x128xf32, #tpu.memory_space<vmem>>) attributes {dimension_semantics = [#tpu.dimension_semantics<parallel>, #tpu.dimension_semantics<arbitrary>], iteration_bounds = array<i64: 2, 1>, scalar_prefetch = 0 : i64, scratch_operands = 0 : i64, tpu.core_type = #tpu.core_type<tc>, window_params = [{transform_indices = @transform_0, window_bounds = array<i64: 1, 8, 128>}, {transform_indices = @transform_1, window_bounds = array<i64: 1, 8, 128>}, {transform_indices = @transform_2, window_bounds = array<i64: 1, 1, 128>}, {transform_indices = @transform_3, window_bounds = array<i64: 1, 1, 128>}, {transform_indices = @transform_4, window_bounds = array<i64: 1, 1, 128>}]} {
    %c0_i32 = arith.constant 0 : i32
    %0 = arith.cmpi eq, %arg1, %c0_i32 : i32
    %1 = arith.extui %0 : i1 to i32
    %c0_i32_0 = arith.constant 0 : i32
    %2 = arith.cmpi ne, %1, %c0_i32_0 : i32
    scf.if %2 {
      %cst_31 = arith.constant 0.000000e+00 : f32
      %57 = vector.broadcast %cst_31 : f32 to vector<1x1x128xf32>
      %c0_32 = arith.constant 0 : index
      %c0_33 = arith.constant 0 : index
      %c0_34 = arith.constant 0 : index
      %58 = vector.load %arg5[%c0_32, %c0_33, %c0_34] : memref<1x1x128xf32, #tpu.memory_space<vmem>>, vector<1x1x128xf32>
      tpu.vector_store %arg5[%c0_32, %c0_33, %c0_34], %57 {strides = array<i32>} : memref<1x1x128xf32, #tpu.memory_space<vmem>>, vector<1x1x128xf32>,
      %cst_35 = arith.constant 0.000000e+00 : f32
      %59 = vector.broadcast %cst_35 : f32 to vector<1x1x128xf32>
      %c0_36 = arith.constant 0 : index
      %c0_37 = arith.constant 0 : index
      %c0_38 = arith.constant 0 : index
      %60 = vector.load %arg6[%c0_36, %c0_37, %c0_38] : memref<1x1x128xf32, #tpu.memory_space<vmem>>, vector<1x1x128xf32>
      tpu.vector_store %arg6[%c0_36, %c0_37, %c0_38], %59 {strides = array<i32>} : memref<1x1x128xf32, #tpu.memory_space<vmem>>, vector<1x1x128xf32>,
    } else {
    }
    %c0 = arith.constant 0 : index
    %c0_1 = arith.constant 0 : index
    %c0_2 = arith.constant 0 : index
    %3 = vector.load %arg2[%c0, %c0_1, %c0_2] : memref<1x8x128xf32, #tpu.memory_space<vmem>>, vector<1x8x128xf32>
    %4 = vector.shape_cast %3 : vector<1x8x128xf32> to vector<8x128xf32>
    %c0_3 = arith.constant 0 : index
    %c0_4 = arith.constant 0 : index
    %c0_5 = arith.constant 0 : index
    %5 = vector.load %arg3[%c0_3, %c0_4, %c0_5] : memref<1x8x128xi8, #tpu.memory_space<vmem>>, vector<1x8x128xi8>
    %6 = vector.shape_cast %5 : vector<1x8x128xi8> to vector<8x128xi8>
    %7 = arith.sitofp %6 : vector<8x128xi8> to vector<8x128xf32>
    %c0_6 = arith.constant 0 : index
    %c0_7 = arith.constant 0 : index
    %c0_8 = arith.constant 0 : index
    %8 = vector.load %arg4[%c0_6, %c0_7, %c0_8] : memref<1x1x128xf32, #tpu.memory_space<vmem>>, vector<1x1x128xf32>
    %9 = tpu.iota {dimensions = array<i32: 0>} : vector<8x128xi32>
    %c0_i32_9 = arith.constant 0 : i32
    %10 = vector.broadcast %c0_i32_9 : i32 to vector<8x128xi32>
    %11 = arith.cmpi eq, %9, %10 : vector<8x128xi32>
    %cst = arith.constant 0.000000e+00 : f32
    %12 = vector.broadcast %cst : f32 to vector<8x128xf32>
    %13 = arith.select %11, %12, %7 : vector<8x128xi1>, vector<8x128xf32>
    %cst_10 = arith.constant 0.000000e+00 : f32
    %14 = vector.broadcast %cst_10 : f32 to vector<8x128xf32>
    %15 = arith.cmpf ogt, %13, %14 : vector<8x128xf32>
    %16 = arith.ori %15, %11 : vector<8x128xi1>
    %cst_11 = arith.constant 0.000000e+00 : f32
    %17 = vector.broadcast %cst_11 : f32 to vector<8x128xf32>
    %18 = arith.cmpf ole, %13, %17 : vector<8x128xf32>
    %cst_12 = arith.constant -1.000000e+30 : f32
    %19 = vector.broadcast %cst_12 : f32 to vector<8x128xf32>
    %20 = arith.select %16, %4, %19 : vector<8x128xi1>, vector<8x128xf32>
    %cst_13 = arith.constant -1.000000e+30 : f32
    %21 = vector.broadcast %cst_13 : f32 to vector<8x128xf32>
    %22 = arith.select %18, %4, %21 : vector<8x128xi1>, vector<8x128xf32>
    %cst_14 = arith.constant dense<0xFF800000> : vector<128xf32>
    %23 = vector.multi_reduction <maximumf>, %20, %cst_14 [0] : vector<8x128xf32> to vector<128xf32>
    %24 = vector.shape_cast %23 : vector<128xf32> to vector<1x128xf32>
    %25 = vector.broadcast %24 : vector<1x128xf32> to vector<8x128xf32>
    %26 = arith.subf %20, %25 : vector<8x128xf32>
    %27 = math.exp %26 : vector<8x128xf32>
    %cst_15 = arith.constant dense<0.000000e+00> : vector<128xf32>
    %28 = vector.multi_reduction <add>, %27, %cst_15 [0] : vector<8x128xf32> to vector<128xf32>
    %29 = vector.shape_cast %28 : vector<128xf32> to vector<1x128xf32>
    %30 = math.log %29 : vector<1x128xf32>
    %31 = arith.addf %24, %30 : vector<1x128xf32>
    %32 = vector.broadcast %31 : vector<1x128xf32> to vector<8x128xf32>
    %33 = arith.subf %32, %20 : vector<8x128xf32>
    %34 = arith.mulf %13, %33 : vector<8x128xf32>
    %cst_16 = arith.constant dense<0.000000e+00> : vector<128xf32>
    %35 = vector.multi_reduction <add>, %34, %cst_16 [0] : vector<8x128xf32> to vector<128xf32>
    %36 = vector.shape_cast %35 : vector<128xf32> to vector<1x128xf32>
    %cst_17 = arith.constant dense<0xFF800000> : vector<128xf32>
    %37 = vector.multi_reduction <maximumf>, %22, %cst_17 [0] : vector<8x128xf32> to vector<128xf32>
    %38 = vector.shape_cast %37 : vector<128xf32> to vector<1x128xf32>
    %39 = vector.broadcast %38 : vector<1x128xf32> to vector<8x128xf32>
    %40 = arith.subf %22, %39 : vector<8x128xf32>
    %41 = math.exp %40 : vector<8x128xf32>
    %cst_18 = arith.constant dense<0.000000e+00> : vector<128xf32>
    %42 = vector.multi_reduction <add>, %41, %cst_18 [0] : vector<8x128xf32> to vector<128xf32>
    %43 = vector.shape_cast %42 : vector<128xf32> to vector<1x128xf32>
    %44 = math.log %43 : vector<1x128xf32>
    %45 = arith.addf %38, %44 : vector<1x128xf32>
    %46 = vector.extract_strided_slice %4 {offsets = [0, 0], sizes = [1, 128], strides = [1, 1]} : vector<8x128xf32> to vector<1x128xf32>
    %47 = arith.subf %45, %46 : vector<1x128xf32>
    %48 = arith.addf %36, %47 : vector<1x128xf32>
    %49 = vector.shape_cast %48 : vector<1x128xf32> to vector<1x1x128xf32>
    %50 = arith.mulf %49, %8 : vector<1x1x128xf32>
    %c0_19 = arith.constant 0 : index
    %c0_20 = arith.constant 0 : index
    %c0_21 = arith.constant 0 : index
    %51 = vector.load %arg5[%c0_19, %c0_20, %c0_21] : memref<1x1x128xf32, #tpu.memory_space<vmem>>, vector<1x1x128xf32>
    %52 = arith.addf %51, %50 : vector<1x1x128xf32>
    %c0_22 = arith.constant 0 : index
    %c0_23 = arith.constant 0 : index
    %c0_24 = arith.constant 0 : index
    %53 = vector.load %arg5[%c0_22, %c0_23, %c0_24] : memref<1x1x128xf32, #tpu.memory_space<vmem>>, vector<1x1x128xf32>
    tpu.vector_store %arg5[%c0_22, %c0_23, %c0_24], %52 {strides = array<i32>} : memref<1x1x128xf32, #tpu.memory_space<vmem>>, vector<1x1x128xf32>,
    %c0_25 = arith.constant 0 : index
    %c0_26 = arith.constant 0 : index
    %c0_27 = arith.constant 0 : index
    %54 = vector.load %arg6[%c0_25, %c0_26, %c0_27] : memref<1x1x128xf32, #tpu.memory_space<vmem>>, vector<1x1x128xf32>
    %55 = arith.addf %54, %8 : vector<1x1x128xf32>
    %c0_28 = arith.constant 0 : index
    %c0_29 = arith.constant 0 : index
    %c0_30 = arith.constant 0 : index
    %56 = vector.load %arg6[%c0_28, %c0_29, %c0_30] : memref<1x1x128xf32, #tpu.memory_space<vmem>>, vector<1x1x128xf32>
    tpu.vector_store %arg6[%c0_28, %c0_29, %c0_30], %55 {strides = array<i32>} : memref<1x1x128xf32, #tpu.memory_space<vmem>>, vector<1x1x128xf32>,
    return
  }
  func.func @transform_0(%arg0: i32, %arg1: i32) -> (i32, i32, i32) {
    %c0_i32 = arith.constant 0 : i32
    %c0_i32_0 = arith.constant 0 : i32
    return %arg0, %c0_i32, %arg1 : i32, i32, i32
  }
  func.func @transform_1(%arg0: i32, %arg1: i32) -> (i32, i32, i32) {
    %c0_i32 = arith.constant 0 : i32
    %c0_i32_0 = arith.constant 0 : i32
    return %arg0, %c0_i32, %arg1 : i32, i32, i32
  }
  func.func @transform_2(%arg0: i32, %arg1: i32) -> (i32, i32, i32) {
    %c0_i32 = arith.constant 0 : i32
    %c0_i32_0 = arith.constant 0 : i32
    return %arg0, %c0_i32, %arg1 : i32, i32, i32
  }
  func.func @transform_3(%arg0: i32, %arg1: i32) -> (i32, i32, i32) {
    %c0_i32 = arith.constant 0 : i32
    %c0_i32_0 = arith.constant 0 : i32
    %c0_i32_1 = arith.constant 0 : i32
    return %arg0, %c0_i32, %c0_i32_0 : i32, i32, i32
  }
  func.func @transform_4(%arg0: i32, %arg1: i32) -> (i32, i32, i32) {
    %c0_i32 = arith.constant 0 : i32
    %c0_i32_0 = arith.constant 0 : i32
    %c0_i32_1 = arith.constant 0 : i32
    return %arg0, %c0_i32, %c0_i32_0 : i32, i32, i32
  }
}

</mosaic_0001>

<llo_original>
// kernel: tpu_custom_call.1
$region0: #{tpu_custom_call.1}
  #allocation0 [shape = 'u32[]', space=smem, size = 0x4, offset = 0x4, fixed_abs, tag = 'smem constant byte address 0x4 - core index']
  #allocation1 [shape = 'u32[144,128]{1,0:T(1,128)}', space=vmem, size = 0x12000, scoped, tag = 'internal scratch']
  %s0 = inlined_call_operand.hbm [shape: f32[2,8,128], index: 0, kind: input, shape index: {}]
  %s1 = inlined_call_operand.hbm [shape: s8[2,8,128], index: 1, kind: input, shape index: {}]
  %s2 = inlined_call_operand.vmem [shape: f32[2,1,128], index: 2, kind: input, shape index: {}]
  %s3 = inlined_call_operand.hbm [shape: f32[2,1,128], index: 3, kind: output, shape index: {0}]
  %s4 = inlined_call_operand.hbm [shape: f32[2,1,128], index: 4, kind: output, shape index: {1}]
  %5 = xla_tuple %s3, %s4
  %s6 = sld [smem:[#allocation0]]
  $region65: #{tpu_custom_call.1} parent=0
    _
  %s8 = ssub.s32 1, %s6
  %s9 = scalar_select 0, %s8, %s6
  $region1: #{tpu_custom_call.1} parent=0
    #allocation2 [shape = 'u8[8192]{0}', space=vmem, size = 0x2000, scoped, tag = 'input window, operand 0']
    #allocation3 [shape = 's32[2]{0}', space=sflag, size = 0x8, scoped, tag = 'scoped memory for tpu_custom_call.1']
    #allocation4 [shape = 's32[2]{0}', space=sflag, size = 0x8, scoped, tag = 'scoped memory for tpu_custom_call.1']
    #allocation5 [shape = 'u8[2048]{0}', space=vmem, size = 0x800, scoped, tag = 'input window, operand 1']
    #allocation6 [shape = 's32[2]{0}', space=sflag, size = 0x8, scoped, tag = 'scoped memory for tpu_custom_call.1']
    #allocation7 [shape = 'u8[1024]{0}', space=vmem, size = 0x400, scoped, tag = 'output window, operand 0']
    #allocation8 [shape = 'u8[1024]{0}', space=vmem, size = 0x400, scoped, tag = 'output window, operand 1']
    #allocation9 [shape = 's32[2]{0}', space=sflag, size = 0x8, scoped, tag = 'scoped memory for tpu_custom_call.1']
    %10 = vsyncpa [#allocation3], 0
    %s11 = scalar_lea.sflag [#allocation3], 1
    %12 = vsyncpa %s11, 0
    %13 = vsyncpa [#allocation6], 0
    %s14 = scalar_lea.sflag [#allocation6], 1
    %15 = vsyncpa %s14, 0
    %16 = vsyncpa [#allocation4], 0
    %s17 = scalar_lea.sflag [#allocation4], 1
    %18 = vsyncpa %s17, 0
    %19 = vsyncpa [#allocation9], 0
    %s20 = scalar_lea.sflag [#allocation9], 1
    %21 = vsyncpa %s20, 0
    loop: start=0, step=1, limit=4
    $region2: #{tpu_custom_call.1} parent=1 // loop_pre_header
      _
    $region3: #{tpu_custom_call.1} parent=1 // loop_header
      %s23 = sphi 0, %s27
      %p24 = scmp.ge.s32.totalorder %s23, 4
      %s30 = sphi 0, %s42
      %s31 = sphi 0, %s38
      %s32 = sphi 0, %s30
      %s33 = sphi 0, %s31
      %s34 = sphi 0, %s32
      %s35 = sphi 0, %s33
      %s47 = sphi 0, %s49
      %s50 = sphi 0, %s47
      %s51 = sphi 0, %s50
      %s67 = sphi 0, %s51
      %s75 = sphi 0, %s77
      %s78 = sphi 0, %s75
      %s79 = sphi 0, %s78
      %s95 = sphi 0, %s79
      %s103 = sphi 0, %s105
      %s106 = sphi 0, %s103
      %s107 = sphi 0, %s106
      %s123 = sphi 0, %s107
      %s129 = sphi 0, %s131
      %s132 = sphi 0, %s129
      %s133 = sphi 0, %s132
      %s149 = sphi 0, %s133
      %s155 = sphi 0, %s157
      %s158 = sphi 0, %s155
      %s159 = sphi 0, %s158
      %s175 = sphi 0, %s159
    $region4: #{tpu_custom_call.1} parent=1 // loop_header_branch
      %26 = sbr.rel (%p24) target = $region8
    $region5: #{tpu_custom_call.1} parent=1 // loop_body
      %s28 = ssub.s32 %s23, 1
      %s29 = ssub.s32 %s23, 2
      %s36 = sadd.s32 1, %s31
      %p37 = scmp.ge.s32.totalorder %s36, 1
      %s38 = scalar_select %p37, 0, %s36
      %s39 = sadd.s32 1, %s30
      %s40 = scalar_select %p37, %s39, %s30
      %p41 = scmp.ge.s32.totalorder %s40, 2
      %s42 = scalar_select %p41, 0, %s40
      %s43 = ssub.s32 %s30, %s42
      %s44 = ssub.s32 %s31, %s38
      %s45 = sor.u32 %s43, %s44
      %p46 = scmp.eq.s32.totalorder %s45, 0
      %s48 = sadd.s32 %s47, 1
      %s49 = scalar_select %p46, %s47, %s48
      %p52 = pneg %p46
      %p53 = scmp.eq.s32.totalorder %s23, 1
      %p54 = por %p52, %p53
      %p55 = scmp.ne.s32.totalorder %s47, %s50
      %p56 = scmp.eq.s32.totalorder %s23, 0
      %p57 = por %p55, %p56
      %p58 = scmp.ne.s32.totalorder %s47, %s50
      %p59 = scmp.eq.s32.totalorder %s28, 1
      %p60 = por %p58, %p59
      %p61 = scmp.ne.s32.totalorder %s50, %s51
      %p62 = scmp.eq.s32.totalorder %s28, 0
      %p63 = por %p61, %p62
      %p64 = scmp.ne.s32.totalorder %s50, %s51
      %p65 = scmp.eq.s32.totalorder %s29, 1
      %p66 = por %p64, %p65
      %p68 = scmp.ne.s32.totalorder %s51, %s67
      %p69 = scmp.eq.s32.totalorder %s29, 0
      %p70 = por %p68, %p69
      %s71 = ssub.s32 %s30, %s42
      %s72 = ssub.s32 %s31, %s38
      %s73 = sor.u32 %s71, %s72
      %p74 = scmp.eq.s32.totalorder %s73, 0
      %s76 = sadd.s32 %s75, 1
      %s77 = scalar_select %p74, %s75, %s76
      %p80 = pneg %p74
      %p81 = scmp.eq.s32.totalorder %s23, 1
      %p82 = por %p80, %p81
      %p83 = scmp.ne.s32.totalorder %s75, %s78
      %p84 = scmp.eq.s32.totalorder %s23, 0
      %p85 = por %p83, %p84
      %p86 = scmp.ne.s32.totalorder %s75, %s78
      %p87 = scmp.eq.s32.totalorder %s28, 1
      %p88 = por %p86, %p87
      %p89 = scmp.ne.s32.totalorder %s78, %s79
      %p90 = scmp.eq.s32.totalorder %s28, 0
      %p91 = por %p89, %p90
      %p92 = scmp.ne.s32.totalorder %s78, %s79
      %p93 = scmp.eq.s32.totalorder %s29, 1
      %p94 = por %p92, %p93
      %p96 = scmp.ne.s32.totalorder %s79, %s95
      %p97 = scmp.eq.s32.totalorder %s29, 0
      %p98 = por %p96, %p97
      %s99 = ssub.s32 %s30, %s42
      %s100 = ssub.s32 %s31, %s38
      %s101 = sor.u32 %s99, %s100
      %p102 = scmp.eq.s32.totalorder %s101, 0
      %s104 = sadd.s32 %s103, 1
      %s105 = scalar_select %p102, %s103, %s104
      %p108 = pneg %p102
      %p109 = scmp.eq.s32.totalorder %s23, 1
      %p110 = por %p108, %p109
      %p111 = scmp.ne.s32.totalorder %s103, %s106
      %p112 = scmp.eq.s32.totalorder %s23, 0
      %p113 = por %p111, %p112
      %p114 = scmp.ne.s32.totalorder %s103, %s106
      %p115 = scmp.eq.s32.totalorder %s28, 1
      %p116 = por %p114, %p115
      %p117 = scmp.ne.s32.totalorder %s106, %s107
      %p118 = scmp.eq.s32.totalorder %s28, 0
      %p119 = por %p117, %p118
      %p120 = scmp.ne.s32.totalorder %s106, %s107
      %p121 = scmp.eq.s32.totalorder %s29, 1
      %p122 = por %p120, %p121
      %p124 = scmp.ne.s32.totalorder %s107, %s123
      %p125 = scmp.eq.s32.totalorder %s29, 0
      %p126 = por %p124, %p125
      %s127 = ssub.s32 %s30, %s42
      %p128 = scmp.eq.s32.totalorder %s127, 0
      %s130 = sadd.s32 %s129, 1
      %s131 = scalar_select %p128, %s129, %s130
      %p134 = pneg %p128
      %p135 = scmp.eq.s32.totalorder %s23, 1
      %p136 = por %p134, %p135
      %p137 = scmp.ne.s32.totalorder %s129, %s132
      %p138 = scmp.eq.s32.totalorder %s23, 0
      %p139 = por %p137, %p138
      %p140 = scmp.ne.s32.totalorder %s129, %s132
      %p141 = scmp.eq.s32.totalorder %s28, 1
      %p142 = por %p140, %p141
      %p143 = scmp.ne.s32.totalorder %s132, %s133
      %p144 = scmp.eq.s32.totalorder %s28, 0
      %p145 = por %p143, %p144
      %p146 = scmp.ne.s32.totalorder %s132, %s133
      %p147 = scmp.eq.s32.totalorder %s29, 1
      %p148 = por %p146, %p147
      %p150 = scmp.ne.s32.totalorder %s133, %s149
      %p151 = scmp.eq.s32.totalorder %s29, 0
      %p152 = por %p150, %p151
      %s153 = ssub.s32 %s30, %s42
      %p154 = scmp.eq.s32.totalorder %s153, 0
      %s156 = sadd.s32 %s155, 1
      %s157 = scalar_select %p154, %s155, %s156
      %p160 = pneg %p154
      %p161 = scmp.eq.s32.totalorder %s23, 1
      %p162 = por %p160, %p161
      %p163 = scmp.ne.s32.totalorder %s155, %s158
      %p164 = scmp.eq.s32.totalorder %s23, 0
      %p165 = por %p163, %p164
      %p166 = scmp.ne.s32.totalorder %s155, %s158
      %p167 = scmp.eq.s32.totalorder %s28, 1
      %p168 = por %p166, %p167
      %p169 = scmp.ne.s32.totalorder %s158, %s159
      %p170 = scmp.eq.s32.totalorder %s28, 0
      %p171 = por %p169, %p170
      %p172 = scmp.ne.s32.totalorder %s158, %s159
      %p173 = scmp.eq.s32.totalorder %s29, 1
      %p174 = por %p172, %p173
      %p176 = scmp.ne.s32.totalorder %s159, %s175
      %p177 = scmp.eq.s32.totalorder %s29, 0
      %p178 = por %p176, %p177
      %p179 = scmp.le.s32.totalorder 1, %s23
      %p180 = scmp.lt.s32.totalorder %s23, 3
      %p181 = pnand %p179, %p180
      %p182 = pneg %p181
      // Predicated region
      $region9: #{tpu_custom_call.1} parent=5 // pred_check
        _
      $region10: #{tpu_custom_call.1} parent=5 // pred_check_branch
        %184 = sbr.rel (%p181) target = $region12
      $region11: #{tpu_custom_call.1} parent=5 // pred_region
        %s185 = ssub.s32 %s23, 1
      $region12: #{tpu_custom_call.1} parent=5 // pred_fallthru
        _
      %p186 = scmp.lt.s32.totalorder %s23, 2
      // Predicated region
      $region13: #{tpu_custom_call.1} parent=5 // pred_check
        %p187 = pneg %p186
      $region14: #{tpu_custom_call.1} parent=5 // pred_check_branch
        %189 = sbr.rel (%p187) target = $region16
      $region15: #{tpu_custom_call.1} parent=5 // pred_region
        // Predicated region
        $region17: #{tpu_custom_call.1} parent=15 // pred_check
          %p190 = pneg %p57
        $region18: #{tpu_custom_call.1} parent=15 // pred_check_branch
          %192 = sbr.rel (%p190) target = $region20
        $region19: #{tpu_custom_call.1} parent=15 // pred_region
          %s193 = sand.u32 %s47, 1
          %s194 = scalar_lea.sflag [#allocation3], %s193
          %s195 = sand.u32 %s47, 1
          %s196 = smul.addr %s195, 8
          %s197 = scalar_lea.vmem [#allocation2], %s196
          %s199 = ssub.s32 128, 128
          %200 = vsyncadd %s194, %s199
          %s201 = sadd.s32 %s31, %s30
          %s202 = smul.addr %s201, 128
          %s203 = scalar_lea.hbm %s0, %s202
          %s205 = sshll.u32 %s197, 4
          %s206 = int_to_ptr.vmem [resolvable:$true] %s205
          %208 = dma.hbm_to_vmem [thread:$0]  %s203, 128, %s206, %s194
        $region20: #{tpu_custom_call.1} parent=15 // pred_fallthru
          _
        // Predicated region
        $region21: #{tpu_custom_call.1} parent=15 // pred_check
          %p209 = pneg %p85
        $region22: #{tpu_custom_call.1} parent=15 // pred_check_branch
          %211 = sbr.rel (%p209) target = $region24
        $region23: #{tpu_custom_call.1} parent=15 // pred_region
          %s212 = sand.u32 %s75, 1
          %s213 = scalar_lea.sflag [#allocation6], %s212
          %s214 = sand.u32 %s75, 1
          %s215 = smul.addr %s214, 2
          %s216 = scalar_lea.vmem [#allocation5], %s215
          %s218 = ssub.s32 32, 32
          %219 = vsyncadd %s213, %s218
          %s220 = sadd.s32 %s31, %s30
          %s221 = smul.addr %s220, 32
          %s222 = scalar_lea.hbm %s1, %s221
          %s224 = sshll.u32 %s216, 4
          %s225 = int_to_ptr.vmem [resolvable:$true] %s224
          %227 = dma.hbm_to_vmem [thread:$0]  %s222, 32, %s225, %s213
        $region24: #{tpu_custom_call.1} parent=15 // pred_fallthru
          _
        // Predicated region
        $region25: #{tpu_custom_call.1} parent=15 // pred_check
          %p228 = pneg %p113
        $region26: #{tpu_custom_call.1} parent=15 // pred_check_branch
          %230 = sbr.rel (%p228) target = $region28
        $region27: #{tpu_custom_call.1} parent=15 // pred_region
          %p231 = scmp.lt.s32.totalorder %s30, 1
          %s232 = scalar_select %p231, %s30, 1
          %p233 = scmp.lt.s32.totalorder %s31, 0
          %s234 = scalar_select %p233, %s31, 0
          %s235 = sadd.s32 %s234, %s232
          %s236 = scalar_lea.vmem %s2, %s235
        $region28: #{tpu_custom_call.1} parent=15 // pred_fallthru
          _
      $region16: #{tpu_custom_call.1} parent=5 // pred_fallthru
        _
      %p237 = scmp.le.s32.totalorder 1, %s23
      %p238 = scmp.lt.s32.totalorder %s23, 3
      %p239 = pnand %p237, %p238
      %p240 = pneg %p239
      // Predicated region
      $region29: #{tpu_custom_call.1} parent=5 // pred_check
        _
      $region30: #{tpu_custom_call.1} parent=5 // pred_check_branch
        %242 = sbr.rel (%p239) target = $region32
      $region31: #{tpu_custom_call.1} parent=5 // pred_region
        %s243 = ssub.s32 %s23, 1
        %s244 = sand.u32 %s50, 1
        %s245 = scalar_lea.sflag [#allocation3], %s244
        %s246 = sand.u32 %s50, 1
        %s247 = smul.addr %s246, 8
        %s248 = scalar_lea.vmem [#allocation2], %s247
        // Predicated region
        $region33: #{tpu_custom_call.1} parent=31 // pred_check
          %p249 = pneg %p63
        $region34: #{tpu_custom_call.1} parent=31 // pred_check_branch
          %251 = sbr.rel (%p249) target = $region36
        $region35: #{tpu_custom_call.1} parent=31 // pred_region
          %252 = dma.done %s245, 128
        $region36: #{tpu_custom_call.1} parent=31 // pred_fallthru
          _
        %s253 = sand.u32 %s78, 1
        %s254 = scalar_lea.sflag [#allocation6], %s253
        %s255 = sand.u32 %s78, 1
        %s256 = smul.addr %s255, 2
        %s257 = scalar_lea.vmem [#allocation5], %s256
        // Predicated region
        $region37: #{tpu_custom_call.1} parent=31 // pred_check
          %p258 = pneg %p91
        $region38: #{tpu_custom_call.1} parent=31 // pred_check_branch
          %260 = sbr.rel (%p258) target = $region40
        $region39: #{tpu_custom_call.1} parent=31 // pred_region
          %261 = dma.done %s254, 32
        $region40: #{tpu_custom_call.1} parent=31 // pred_fallthru
          _
        %s262 = sand.u32 %s50, 1
        %s263 = scalar_lea.sflag [#allocation3], %s262
        %s264 = sand.u32 %s50, 1
        %s265 = smul.addr %s264, 8
        %s266 = scalar_lea.vmem [#allocation2], %s265
        %p267 = pneg %p63
        %p268 = pneg %p60
        %s269 = sand.u32 %s78, 1
        %s270 = scalar_lea.sflag [#allocation6], %s269
        %s271 = sand.u32 %s78, 1
        %s272 = smul.addr %s271, 2
        %s273 = scalar_lea.vmem [#allocation5], %s272
        %p274 = pneg %p91
        %p275 = pneg %p88
        %p276 = scmp.lt.s32.totalorder %s32, 1
        %s277 = scalar_select %p276, %s32, 1
        %p278 = scmp.lt.s32.totalorder %s33, 0
        %s279 = scalar_select %p278, %s33, 0
        %s280 = sadd.s32 %s279, %s277
        %s281 = scalar_lea.vmem %s2, %s280
        %p282 = pneg %p119
        %p283 = pneg %p116
        %p284 = pneg %p145
        %p285 = pneg %p142
        %s286 = sand.u32 %s132, 1
        %s287 = scalar_lea.sflag [#allocation4], %s286
        %s288 = sand.u32 %s132, 1
        %s289 = scalar_lea.vmem [#allocation7], %s288
        %p290 = pneg %p171
        %p291 = pneg %p168
        %s292 = sand.u32 %s158, 1
        %s293 = scalar_lea.sflag [#allocation9], %s292
        %s294 = sand.u32 %s158, 1
        %s295 = scalar_lea.vmem [#allocation8], %s294
        %p296 = scmp.lt.s32.totalorder %s32, 1
        %s297 = scalar_select %p296, %s32, 1
        %p298 = scmp.lt.s32.totalorder %s33, 0
        %s299 = scalar_select %p298, %s33, 0
        %s300 = sadd.s32 %s299, %s297
        %s301 = scalar_lea.vmem %s2, %s300
        %p302 = scmp.eq.s32.totalorder %s33, 0
        // Predicated region
        $region41: #{tpu_custom_call.1} parent=31 // pred_check
          %p303 = pneg %p302
        $region42: #{tpu_custom_call.1} parent=31 // pred_check_branch
          %305 = sbr.rel (%p303) target = $region44
        $region43: #{tpu_custom_call.1} parent=31 // pred_region
          %306 = vst [vmem:[%s289] sm:$0x1] 0.0
          %307 = vst [vmem:[%s295] sm:$0x1] 0.0
        $region44: #{tpu_custom_call.1} parent=31 // pred_fallthru
          _
        %v308 = vld [vmem:[%s248] sm:$0xff]
        %v309 = vld [vmem:[%s257] sm:$0x3]
        %v310 = vunpack.c.0.s8 %v309
        %v311 = vcvt.s32.f32 %v310
        %v312 = vld [vmem:[%s301] sm:$0x1]
        %v313 = vlaneseq
        %v314 = vshrl.u32 %v313, 7
        %vm315 = vcmp.eq.s32.totalorder %v314, 0
        %v316 = vsel %vm315, 0.0, %v311
        %vm317 = vcmp.gt.f32.partialorder %v316, 0.0
        %vm318 = vmor %vm317, %vm315
        %vm319 = vcmp.le.f32.partialorder %v316, 0.0
        %v320 = vsel %vm318, %v308, -1e+30
        %v321 = vsel %vm319, %v308, -1e+30
        %v322 = vrot.slane %v320, 4
        %v323 = vmax.f32 %v320, %v322
        %v324 = vrot.slane %v323, 2
        %v325 = vmax.f32 %v323, %v324
        %v326 = vrot.slane %v325, 1
        %v327 = vmax.f32 %v325, %v326
        %v328 = vsub.f32 %v320, %v327
        %v329 = vmul.f32 %v328, 1.442695
        %v330 = vpow.pop %v329
        %v331 = vrot.slane %v330, 4
        %v332 = vadd.f32 %v330, %v331
        %v333 = vrot.slane %v332, 2
        %v334 = vadd.f32 %v332, %v333
        %v335 = vrot.slane %v334, 1
        %v336 = vadd.f32 %v334, %v335
        %v337 = vlog2.pop %v336
        %v338 = vmul.f32 %v337, 0.6931472
        %v339 = vadd.f32 %v327, %v338
        %v340 = vsub.f32 %v339, %v320
        %v341 = vmul.f32 %v316, %v340
        %v342 = vrot.slane %v341, 4
        %v343 = vadd.f32 %v341, %v342
        %v344 = vrot.slane %v343, 2
        %v345 = vadd.f32 %v343, %v344
        %v346 = vrot.slane %v345, 1
        %v347 = vadd.f32 %v345, %v346
        %v348 = vrot.slane %v321, 4
        %v349 = vmax.f32 %v321, %v348
        %v350 = vrot.slane %v349, 2
        %v351 = vmax.f32 %v349, %v350
        %v352 = vrot.slane %v351, 1
        %v353 = vmax.f32 %v351, %v352
        %v354 = vsub.f32 %v321, %v353
        %v355 = vmul.f32 %v354, 1.442695
        %v356 = vpow.pop %v355
        %v357 = vrot.slane %v356, 4
        %v358 = vadd.f32 %v356, %v357
        %v359 = vrot.slane %v358, 2
        %v360 = vadd.f32 %v358, %v359
        %v361 = vrot.slane %v360, 1
        %v362 = vadd.f32 %v360, %v361
        %v363 = vlog2.pop %v362
        %v364 = vmul.f32 %v363, 0.6931472
        %v365 = vadd.f32 %v353, %v364
        %v366 = vsub.f32 %v365, %v308
        %v367 = vadd.f32 %v347, %v366
        %v368 = vmul.f32 %v367, %v312
        %v369 = vld [vmem:[%s289] sm:$0x1]
        %v370 = vadd.f32 %v369, %v368
        %371 = vst [vmem:[%s289] sm:$0x1] %v370
        %v372 = vld [vmem:[%s295] sm:$0x1]
        %v373 = vadd.f32 %v372, %v312
        %374 = vst [vmem:[%s295] sm:$0x1] %v373
        %s375 = sand.u32 %s132, 1
        %s376 = scalar_lea.sflag [#allocation4], %s375
        %s377 = sand.u32 %s132, 1
        %s378 = scalar_lea.vmem [#allocation7], %s377
        %s379 = sand.u32 %s158, 1
        %s380 = scalar_lea.sflag [#allocation9], %s379
        %s381 = sand.u32 %s158, 1
        %s382 = scalar_lea.vmem [#allocation8], %s381
        // Predicated region
        $region45: #{tpu_custom_call.1} parent=31 // pred_check
          %p383 = pneg %p142
        $region46: #{tpu_custom_call.1} parent=31 // pred_check_branch
          %385 = sbr.rel (%p383) target = $region48
        $region47: #{tpu_custom_call.1} parent=31 // pred_region
          %s387 = ssub.s32 16, 16
          %388 = vsyncadd %s376, %s387
          %s389 = smul.addr %s32, 16
          %s390 = scalar_lea.hbm %s3, %s389
          %s392 = sshll.u32 %s378, 4
          %s393 = int_to_ptr.vmem [resolvable:$true] %s392
          %395 = dma.vmem_to_hbm [thread:$0]  %s393, 16, %s390, %s376
        $region48: #{tpu_custom_call.1} parent=31 // pred_fallthru
          _
        // Predicated region
        $region49: #{tpu_custom_call.1} parent=31 // pred_check
          %p396 = pneg %p168
        $region50: #{tpu_custom_call.1} parent=31 // pred_check_branch
          %398 = sbr.rel (%p396) target = $region52
        $region51: #{tpu_custom_call.1} parent=31 // pred_region
          %s400 = ssub.s32 16, 16
          %401 = vsyncadd %s380, %s400
          %s402 = smul.addr %s32, 16
          %s403 = scalar_lea.hbm %s4, %s402
          %s405 = sshll.u32 %s382, 4
          %s406 = int_to_ptr.vmem [resolvable:$true] %s405
          %408 = dma.vmem_to_hbm [thread:$0]  %s406, 16, %s403, %s380
        $region52: #{tpu_custom_call.1} parent=31 // pred_fallthru
          _
      $region32: #{tpu_custom_call.1} parent=5 // pred_fallthru
        _
      %p409 = scmp.le.s32.totalorder 2, %s23
      // Predicated region
      $region53: #{tpu_custom_call.1} parent=5 // pred_check
        %p410 = pneg %p409
      $region54: #{tpu_custom_call.1} parent=5 // pred_check_branch
        %412 = sbr.rel (%p410) target = $region56
      $region55: #{tpu_custom_call.1} parent=5 // pred_region
        %s413 = ssub.s32 %s23, 2
        // Predicated region
        $region57: #{tpu_custom_call.1} parent=55 // pred_check
          %p414 = pneg %p148
        $region58: #{tpu_custom_call.1} parent=55 // pred_check_branch
          %416 = sbr.rel (%p414) target = $region60
        $region59: #{tpu_custom_call.1} parent=55 // pred_region
          %s417 = sand.u32 %s133, 1
          %s418 = scalar_lea.sflag [#allocation4], %s417
          %s419 = sand.u32 %s133, 1
          %s420 = scalar_lea.vmem [#allocation7], %s419
          %421 = dma.done %s418, 16
        $region60: #{tpu_custom_call.1} parent=55 // pred_fallthru
          _
        // Predicated region
        $region61: #{tpu_custom_call.1} parent=55 // pred_check
          %p422 = pneg %p174
        $region62: #{tpu_custom_call.1} parent=55 // pred_check_branch
          %424 = sbr.rel (%p422) target = $region64
        $region63: #{tpu_custom_call.1} parent=55 // pred_region
          %s425 = sand.u32 %s159, 1
          %s426 = scalar_lea.sflag [#allocation9], %s425
          %s427 = sand.u32 %s159, 1
          %s428 = scalar_lea.vmem [#allocation8], %s427
          %429 = dma.done %s426, 16
        $region64: #{tpu_custom_call.1} parent=55 // pred_fallthru
          _
      $region56: #{tpu_custom_call.1} parent=5 // pred_fallthru
        _
    $region6: #{tpu_custom_call.1} parent=1 // loop_footer
      %s27 = sadd.s32 1, %s23
    $region7: #{tpu_custom_call.1} parent=1 // loop_footer_branch
      %22 = sbr.rel target = $region3
    $region8: #{tpu_custom_call.1} parent=1 // loop_exit
      _
    %430 = vsyncpa [#allocation3], 1
    %s431 = scalar_lea.sflag [#allocation3], 1
    %432 = vsyncpa %s431, 1
    %433 = vsyncpa [#allocation6], 1
    %s434 = scalar_lea.sflag [#allocation6], 1
    %435 = vsyncpa %s434, 1
    %436 = vsyncpa [#allocation4], 1
    %s437 = scalar_lea.sflag [#allocation4], 1
    %438 = vsyncpa %s437, 1
    %439 = vsyncpa [#allocation9], 1
    %s440 = scalar_lea.sflag [#allocation9], 1
    %441 = vsyncpa %s440, 1

</llo_original>
